<compile_context>
chip_gen: v7x
topology: tpu7x:2x2x1
jax: 0.10.0
libtpu: 0.0.40
codegen_flags: <defaults>
</compile_context>

<pallas_src>
import functools

import jax
import jax.numpy as jnp
from jax import lax
from jax.experimental import pallas as pl
from jax.experimental.pallas import tpu as pltpu


def _fmix32(h):
    """murmur3 32-bit finalizer: strong avalanche on consecutive counters."""
    h = h ^ (h >> 16)
    h = h * jnp.uint32(0x85EBCA6B)
    h = h ^ (h >> 13)
    h = h * jnp.uint32(0xC2B2AE35)
    h = h ^ (h >> 16)
    return h


def _dropout_kernel(seed_ref, x_ref, o_ref, *, keep_threshold, scale):
    rows, cols = x_ref.shape
    # Globally-unique element index for this tile so every tile (and every
    # TensorCore on v7x) draws a distinct, uncorrelated random stream.
    row0 = (pl.program_id(0) * rows).astype(jnp.uint32)
    r = lax.broadcasted_iota(jnp.int32, (rows, cols), 0).astype(jnp.uint32) + row0
    c = lax.broadcasted_iota(jnp.int32, (rows, cols), 1).astype(jnp.uint32)
    idx = r * jnp.uint32(cols) + c

    seed = seed_ref[0].astype(jnp.uint32)
    bits = _fmix32(idx ^ (seed * jnp.uint32(0x9E3779B1)))

    # keep element iff uniform-u32 >= drop_p * 2^32  (P[keep] = 1 - drop_p);
    # fold the keep mask and the 1/(1-p) scale into one select + one multiply.
    keep = bits >= jnp.uint32(keep_threshold)
    o_ref[...] = jnp.where(keep, x_ref[...] * scale, 0.0).astype(o_ref.dtype)


_TARGET_BLOCK_BYTES = 2 * 1024 * 1024  # ~2 MiB per buffer (see header comment)


def _choose_cols(n):
    """Widest lane-dense width dividing n (no pad); else 128 with minimal pad."""
    for c in (2048, 1024, 512, 256, 128):
        if n % c == 0:
            return c, False
    return 128, True


def dropout(x, drop_p, seed, training=True):
    """Pallas implementation of the DropOut module's forward pass."""
    if (not training) or float(drop_p) == 0.0:
        return x
    drop_p = float(drop_p)
    if not (0.0 <= drop_p < 1.0):
        raise ValueError(f"drop_p must be in [0, 1), got {drop_p}")

    orig_shape = x.shape
    flat = x.reshape(-1)
    n = flat.shape[0]

    cols, needs_pad = _choose_cols(n)
    if needs_pad:
        # Rare path: n not a multiple of 128 lanes -> pad the minimum amount.
        flat = jnp.pad(flat, (0, (-n) % cols))
    rows = flat.shape[0] // cols
    slab = flat.reshape(rows, cols)

    itemsize = slab.dtype.itemsize
    tile_rows = max(8, _TARGET_BLOCK_BYTES // (cols * itemsize))
    tile_rows = (tile_rows // 8) * 8          # sublane-aligned
    tile_rows = min(rows, tile_rows)          # == rows (full extent) if small
    grid = (pl.cdiv(rows, tile_rows),)

    keep_threshold = min(int(round(drop_p * 4294967296.0)), 4294967295)
    scale = 1.0 / (1.0 - drop_p)

    kernel = functools.partial(
        _dropout_kernel, keep_threshold=keep_threshold, scale=scale)

    seed_arr = jnp.asarray([seed], dtype=jnp.int32)

    out = pl.pallas_call(
        kernel,
        out_shape=jax.ShapeDtypeStruct(slab.shape, slab.dtype),
        grid=grid,
        in_specs=[
            pl.BlockSpec(memory_space=pltpu.MemorySpace.SMEM),   # seed scalar
            pl.BlockSpec((tile_rows, cols), lambda i: (i, 0)),   # x row-tile
        ],
        out_specs=pl.BlockSpec((tile_rows, cols), lambda i: (i, 0)),
        compiler_params=pltpu.CompilerParams(
            dimension_semantics=("parallel",)),
        cost_estimate=pl.CostEstimate(
            flops=2 * rows * cols,
            transcendentals=0,
            bytes_accessed=2 * rows * cols * itemsize),
    )(seed_arr, slab)

    if needs_pad:
        out = out.reshape(-1)[:n]
    return out.reshape(orig_shape)


if __name__ == "__main__":
    key = jax.random.PRNGKey(0)
    x = jax.random.normal(key, (2, 4, 16, 16), dtype=jnp.float32)  # NCHW
    drop_p = 0.5

    y = jax.block_until_ready(dropout(x, drop_p, seed=1234, training=True))

    # Sanity: every output element is either 0 (dropped) or x / (1 - p).
    scaled = x / (1.0 - drop_p)
    ok = jnp.all(
        jnp.isclose(y, 0.0, atol=1e-6) | jnp.isclose(y, scaled, rtol=1e-6, atol=1e-6)
    )
    keep_frac = float(jnp.mean((y != 0.0).astype(jnp.float32)))
    assert bool(ok), "output elements are not {0, x/(1-p)}"
    assert 0.35 < keep_frac < 0.65, f"keep fraction {keep_frac} implausible for p=0.5"

    # Eval mode is the identity (handled in the wrapper, matching PyTorch).
    y_eval = jax.block_until_ready(dropout(x, drop_p, seed=1234, training=False))
    assert bool(jnp.array_equal(y_eval, x))

    print("KERNEL_OK")
</pallas_src>

<mosaic_0001>
module attributes {stable_mosaic.version = 11 : i64} {
  func.func @_dropout_kernel(%arg0: i32, %arg1: memref<1xi32, #tpu.memory_space<smem>>, %arg2: memref<1x2048xf32, #tpu.memory_space<vmem>>, %arg3: memref<1x2048xf32, #tpu.memory_space<vmem>>) attributes {dimension_semantics = [#tpu.dimension_semantics<parallel>], iteration_bounds = array<i64: 1>, scalar_prefetch = 0 : i64, scratch_operands = 0 : i64, tpu.core_type = #tpu.core_type<tc>, window_params = [{transform_indices = @transform_0, window_bounds = array<i64: 1>}, {transform_indices = @transform_1, window_bounds = array<i64: 1, 2048>}, {transform_indices = @transform_2, window_bounds = array<i64: 1, 2048>}]} {
    %c1_i32 = arith.constant 1 : i32
    %0 = arith.muli %arg0, %c1_i32 : i32
    %1 = tpu.iota {dimensions = array<i32: 0>} : vector<1x2048xi32>
    %2 = vector.broadcast %0 : i32 to vector<1x2048xi32>
    %3 = arith.addi %1, %2 : vector<1x2048xi32>
    %4 = tpu.iota {dimensions = array<i32: 1>} : vector<1x2048xi32>
    %c2048_i32 = arith.constant 2048 : i32
    %5 = vector.broadcast %c2048_i32 : i32 to vector<1x2048xi32>
    %6 = arith.muli %3, %5 : vector<1x2048xi32>
    %7 = arith.addi %6, %4 : vector<1x2048xi32>
    %c0 = arith.constant 0 : index
    %8 = memref.load %arg1[%c0] : memref<1xi32, #tpu.memory_space<smem>>
    %c-1640531535_i32 = arith.constant -1640531535 : i32
    %9 = arith.muli %8, %c-1640531535_i32 : i32
    %10 = vector.broadcast %9 : i32 to vector<1x2048xi32>
    %11 = arith.xori %7, %10 : vector<1x2048xi32>
    %c16_i32 = arith.constant 16 : i32
    %12 = vector.broadcast %c16_i32 : i32 to vector<1x2048xi32>
    %13 = arith.shrui %11, %12 : vector<1x2048xi32>
    %14 = arith.xori %11, %13 : vector<1x2048xi32>
    %c-2048144789_i32 = arith.constant -2048144789 : i32
    %15 = vector.broadcast %c-2048144789_i32 : i32 to vector<1x2048xi32>
    %16 = arith.muli %14, %15 : vector<1x2048xi32>
    %c13_i32 = arith.constant 13 : i32
    %17 = vector.broadcast %c13_i32 : i32 to vector<1x2048xi32>
    %18 = arith.shrui %16, %17 : vector<1x2048xi32>
    %19 = arith.xori %16, %18 : vector<1x2048xi32>
    %c-1028477387_i32 = arith.constant -1028477387 : i32
    %20 = vector.broadcast %c-1028477387_i32 : i32 to vector<1x2048xi32>
    %21 = arith.muli %19, %20 : vector<1x2048xi32>
    %c16_i32_0 = arith.constant 16 : i32
    %22 = vector.broadcast %c16_i32_0 : i32 to vector<1x2048xi32>
    %23 = arith.shrui %21, %22 : vector<1x2048xi32>
    %24 = arith.xori %21, %23 : vector<1x2048xi32>
    %c-2147483648_i32 = arith.constant -2147483648 : i32
    %25 = vector.broadcast %c-2147483648_i32 : i32 to vector<1x2048xi32>
    %26 = arith.cmpi uge, %24, %25 : vector<1x2048xi32>
    %c0_1 = arith.constant 0 : index
    %c0_2 = arith.constant 0 : index
    %27 = vector.load %arg2[%c0_1, %c0_2] : memref<1x2048xf32, #tpu.memory_space<vmem>>, vector<1x2048xf32>
    %cst = arith.constant 2.000000e+00 : f32
    %28 = vector.broadcast %cst : f32 to vector<1x2048xf32>
    %29 = arith.mulf %27, %28 : vector<1x2048xf32>
    %cst_3 = arith.constant 0.000000e+00 : f32
    %30 = vector.broadcast %cst_3 : f32 to vector<1x2048xf32>
    %31 = arith.select %26, %29, %30 : vector<1x2048xi1>, vector<1x2048xf32>
    %c0_4 = arith.constant 0 : index
    %c0_5 = arith.constant 0 : index
    %32 = vector.load %arg3[%c0_4, %c0_5] : memref<1x2048xf32, #tpu.memory_space<vmem>>, vector<1x2048xf32>
    tpu.vector_store %arg3[%c0_4, %c0_5], %31 {strides = array<i32>} : memref<1x2048xf32, #tpu.memory_space<vmem>>, vector<1x2048xf32>,
    return
  }
  func.func @transform_0(%arg0: i32) -> i32 {
    %c0_i32 = arith.constant 0 : i32
    %c0_i32_0 = arith.constant 0 : i32
    return %c0_i32 : i32
  }
  func.func @transform_1(%arg0: i32) -> (i32, i32) {
    %c0_i32 = arith.constant 0 : i32
    %c0_i32_0 = arith.constant 0 : i32
    return %arg0, %c0_i32 : i32, i32
  }
  func.func @transform_2(%arg0: i32) -> (i32, i32) {
    %c0_i32 = arith.constant 0 : i32
    %c0_i32_0 = arith.constant 0 : i32
    return %arg0, %c0_i32 : i32, i32
  }
}

</mosaic_0001>

<llo_original>
// kernel: tpu_custom_call.1
$region0: #{tpu_custom_call.1}
  #allocation0 [shape = 'u32[]', space=smem, size = 0x4, offset = 0x4, fixed_abs, tag = 'smem constant byte address 0x4 - core index']
  #allocation1 [shape = 'u32[144,128]{1,0:T(1,128)}', space=vmem, size = 0x12000, scoped, tag = 'internal scratch']
  #allocation2 [shape = 's32[1]{0:T(128)S(6)}', space=smem, size = 0x200, scoped, tag = 'scoped memory for tpu_custom_call.1']
  %s0 = inlined_call_operand.<no memory space> [shape: s32[1], index: 0, kind: input, shape index: {}]
  %s1 = inlined_call_operand.hbm [shape: f32[1,2048], index: 1, kind: input, shape index: {}]
  %s2 = inlined_call_operand.hbm [shape: f32[1,2048], index: 2, kind: output, shape index: {}]
  %s3 = sld [smem:[#allocation0]]
  $region22: #{tpu_custom_call.1} parent=0
    _
  %s5 = ssub.s32 1, %s3
  %s6 = scalar_select 0, %s5, %s3
  %7 = sst [smem:[#allocation2]] %s0
  $region1: #{tpu_custom_call.1} parent=0
    #allocation3 [shape = 'u8[8192]{0}', space=vmem, size = 0x2000, scoped, tag = 'input window, operand 1, single buffered']
    #allocation4 [shape = 's32[1]{0}', space=sflag, size = 0x4, scoped, tag = 'scoped memory for tpu_custom_call.1']
    #allocation5 [shape = 's32[1]{0}', space=sflag, size = 0x4, scoped, tag = 'scoped memory for tpu_custom_call.1']
    #allocation6 [shape = 'u8[8192]{0}', space=vmem, size = 0x2000, scoped, tag = 'output window, operand 0, single buffered']
    %8 = vsyncpa [#allocation4], 0
    %9 = vsyncpa [#allocation5], 0
    // Predicated region
    $region2: #{tpu_custom_call.1} parent=1 // pred_check
      _
    $region3: #{tpu_custom_call.1} parent=1 // pred_check_branch
      %11 = sbr.rel (0) target = $region5
    $region4: #{tpu_custom_call.1} parent=1 // pred_region
      _
    $region5: #{tpu_custom_call.1} parent=1 // pred_fallthru
      _
    // Predicated region
    $region6: #{tpu_custom_call.1} parent=1 // pred_check
      _
    $region7: #{tpu_custom_call.1} parent=1 // pred_check_branch
      %13 = sbr.rel (0) target = $region9
    $region8: #{tpu_custom_call.1} parent=1 // pred_region
      %s15 = ssub.s32 256, 256
      %16 = vsyncadd [#allocation4], %s15
      %s18 = sshll.u32 [#allocation3], 4
      %s19 = int_to_ptr.vmem [resolvable:$true] %s18
      %21 = dma.hbm_to_vmem [thread:$0]  %s1, 256, %s19, [#allocation4]
    $region9: #{tpu_custom_call.1} parent=1 // pred_fallthru
      _
    // Predicated region
    $region10: #{tpu_custom_call.1} parent=1 // pred_check
      _
    $region11: #{tpu_custom_call.1} parent=1 // pred_check_branch
      %23 = sbr.rel (0) target = $region13
    $region12: #{tpu_custom_call.1} parent=1 // pred_region
      %24 = dma.done [#allocation4], 256
    $region13: #{tpu_custom_call.1} parent=1 // pred_fallthru
      _
    %v25 = vlaneseq
    %v26 = vshrl.u32 %v25, 7
    %v27 = vstv 0
    %v28 = vadd.s32 %v26, %v27
    %v29 = vlaneseq
    %v30 = vand.u32 %v29, 127
    %v31 = vadd.s32 %v30, 128
    %v32 = vadd.s32 %v30, 256
    %v33 = vadd.s32 %v30, 384
    %v34 = vadd.s32 %v30, 512
    %v35 = vadd.s32 %v30, 640
    %v36 = vadd.s32 %v30, 768
    %v37 = vadd.s32 %v30, 896
    %v38 = vadd.s32 %v30, 1024
    %v39 = vadd.s32 %v30, 1152
    %v40 = vadd.s32 %v30, 1280
    %v41 = vadd.s32 %v30, 1408
    %v42 = vadd.s32 %v30, 1536
    %v43 = vadd.s32 %v30, 1664
    %v44 = vadd.s32 %v30, 1792
    %v45 = vadd.s32 %v30, 1920
    %v46 = vmul.u32 %v28, 2048
    %v47 = vadd.s32 %v46, %v30
    %v48 = vadd.s32 %v46, %v31
    %v49 = vadd.s32 %v46, %v32
    %v50 = vadd.s32 %v46, %v33
    %v51 = vadd.s32 %v46, %v34
    %v52 = vadd.s32 %v46, %v35
    %v53 = vadd.s32 %v46, %v36
    %v54 = vadd.s32 %v46, %v37
    %v55 = vadd.s32 %v46, %v38
    %v56 = vadd.s32 %v46, %v39
    %v57 = vadd.s32 %v46, %v40
    %v58 = vadd.s32 %v46, %v41
    %v59 = vadd.s32 %v46, %v42
    %v60 = vadd.s32 %v46, %v43
    %v61 = vadd.s32 %v46, %v44
    %v62 = vadd.s32 %v46, %v45
    %s63 = sld [smem:[#allocation2]]
    %s64 = smul.u32 %s63, 2654435761
    %v65 = vstv %s64
    %v66 = vxor.u32 %v47, %v65
    %v67 = vxor.u32 %v48, %v65
    %v68 = vxor.u32 %v49, %v65
    %v69 = vxor.u32 %v50, %v65
    %v70 = vxor.u32 %v51, %v65
    %v71 = vxor.u32 %v52, %v65
    %v72 = vxor.u32 %v53, %v65
    %v73 = vxor.u32 %v54, %v65
    %v74 = vxor.u32 %v55, %v65
    %v75 = vxor.u32 %v56, %v65
    %v76 = vxor.u32 %v57, %v65
    %v77 = vxor.u32 %v58, %v65
    %v78 = vxor.u32 %v59, %v65
    %v79 = vxor.u32 %v60, %v65
    %v80 = vxor.u32 %v61, %v65
    %v81 = vxor.u32 %v62, %v65
    %v82 = vshrl.u32 %v66, 16
    %v83 = vshrl.u32 %v67, 16
    %v84 = vshrl.u32 %v68, 16
    %v85 = vshrl.u32 %v69, 16
    %v86 = vshrl.u32 %v70, 16
    %v87 = vshrl.u32 %v71, 16
    %v88 = vshrl.u32 %v72, 16
    %v89 = vshrl.u32 %v73, 16
    %v90 = vshrl.u32 %v74, 16
    %v91 = vshrl.u32 %v75, 16
    %v92 = vshrl.u32 %v76, 16
    %v93 = vshrl.u32 %v77, 16
    %v94 = vshrl.u32 %v78, 16
    %v95 = vshrl.u32 %v79, 16
    %v96 = vshrl.u32 %v80, 16
    %v97 = vshrl.u32 %v81, 16
    %v98 = vxor.u32 %v66, %v82
    %v99 = vxor.u32 %v67, %v83
    %v100 = vxor.u32 %v68, %v84
    %v101 = vxor.u32 %v69, %v85
    %v102 = vxor.u32 %v70, %v86
    %v103 = vxor.u32 %v71, %v87
    %v104 = vxor.u32 %v72, %v88
    %v105 = vxor.u32 %v73, %v89
    %v106 = vxor.u32 %v74, %v90
    %v107 = vxor.u32 %v75, %v91
    %v108 = vxor.u32 %v76, %v92
    %v109 = vxor.u32 %v77, %v93
    %v110 = vxor.u32 %v78, %v94
    %v111 = vxor.u32 %v79, %v95
    %v112 = vxor.u32 %v80, %v96
    %v113 = vxor.u32 %v81, %v97
    %v114 = vmul.u32 %v98, 2246822507
    %v115 = vmul.u32 %v99, 2246822507
    %v116 = vmul.u32 %v100, 2246822507
    %v117 = vmul.u32 %v101, 2246822507
    %v118 = vmul.u32 %v102, 2246822507
    %v119 = vmul.u32 %v103, 2246822507
    %v120 = vmul.u32 %v104, 2246822507
    %v121 = vmul.u32 %v105, 2246822507
    %v122 = vmul.u32 %v106, 2246822507
    %v123 = vmul.u32 %v107, 2246822507
    %v124 = vmul.u32 %v108, 2246822507
    %v125 = vmul.u32 %v109, 2246822507
    %v126 = vmul.u32 %v110, 2246822507
    %v127 = vmul.u32 %v111, 2246822507
    %v128 = vmul.u32 %v112, 2246822507
    %v129 = vmul.u32 %v113, 2246822507
    %v130 = vshrl.u32 %v114, 13
    %v131 = vshrl.u32 %v115, 13
    %v132 = vshrl.u32 %v116, 13
    %v133 = vshrl.u32 %v117, 13
    %v134 = vshrl.u32 %v118, 13
    %v135 = vshrl.u32 %v119, 13
    %v136 = vshrl.u32 %v120, 13
    %v137 = vshrl.u32 %v121, 13
    %v138 = vshrl.u32 %v122, 13
    %v139 = vshrl.u32 %v123, 13
    %v140 = vshrl.u32 %v124, 13
    %v141 = vshrl.u32 %v125, 13
    %v142 = vshrl.u32 %v126, 13
    %v143 = vshrl.u32 %v127, 13
    %v144 = vshrl.u32 %v128, 13
    %v145 = vshrl.u32 %v129, 13
    %v146 = vxor.u32 %v114, %v130
    %v147 = vxor.u32 %v115, %v131
    %v148 = vxor.u32 %v116, %v132
    %v149 = vxor.u32 %v117, %v133
    %v150 = vxor.u32 %v118, %v134
    %v151 = vxor.u32 %v119, %v135
    %v152 = vxor.u32 %v120, %v136
    %v153 = vxor.u32 %v121, %v137
    %v154 = vxor.u32 %v122, %v138
    %v155 = vxor.u32 %v123, %v139
    %v156 = vxor.u32 %v124, %v140
    %v157 = vxor.u32 %v125, %v141
    %v158 = vxor.u32 %v126, %v142
    %v159 = vxor.u32 %v127, %v143
    %v160 = vxor.u32 %v128, %v144
    %v161 = vxor.u32 %v129, %v145
    %v162 = vmul.u32 %v146, 3266489909
    %v163 = vmul.u32 %v147, 3266489909
    %v164 = vmul.u32 %v148, 3266489909
    %v165 = vmul.u32 %v149, 3266489909
    %v166 = vmul.u32 %v150, 3266489909
    %v167 = vmul.u32 %v151, 3266489909
    %v168 = vmul.u32 %v152, 3266489909
    %v169 = vmul.u32 %v153, 3266489909
    %v170 = vmul.u32 %v154, 3266489909
    %v171 = vmul.u32 %v155, 3266489909
    %v172 = vmul.u32 %v156, 3266489909
    %v173 = vmul.u32 %v157, 3266489909
    %v174 = vmul.u32 %v158, 3266489909
    %v175 = vmul.u32 %v159, 3266489909
    %v176 = vmul.u32 %v160, 3266489909
    %v177 = vmul.u32 %v161, 3266489909
    %v178 = vshrl.u32 %v162, 16
    %v179 = vshrl.u32 %v163, 16
    %v180 = vshrl.u32 %v164, 16
    %v181 = vshrl.u32 %v165, 16
    %v182 = vshrl.u32 %v166, 16
    %v183 = vshrl.u32 %v167, 16
    %v184 = vshrl.u32 %v168, 16
    %v185 = vshrl.u32 %v169, 16
    %v186 = vshrl.u32 %v170, 16
    %v187 = vshrl.u32 %v171, 16
    %v188 = vshrl.u32 %v172, 16
    %v189 = vshrl.u32 %v173, 16
    %v190 = vshrl.u32 %v174, 16
    %v191 = vshrl.u32 %v175, 16
    %v192 = vshrl.u32 %v176, 16
    %v193 = vshrl.u32 %v177, 16
    %v194 = vxor.u32 %v162, %v178
    %v195 = vxor.u32 %v163, %v179
    %v196 = vxor.u32 %v164, %v180
    %v197 = vxor.u32 %v165, %v181
    %v198 = vxor.u32 %v166, %v182
    %v199 = vxor.u32 %v167, %v183
    %v200 = vxor.u32 %v168, %v184
    %v201 = vxor.u32 %v169, %v185
    %v202 = vxor.u32 %v170, %v186
    %v203 = vxor.u32 %v171, %v187
    %v204 = vxor.u32 %v172, %v188
    %v205 = vxor.u32 %v173, %v189
    %v206 = vxor.u32 %v174, %v190
    %v207 = vxor.u32 %v175, %v191
    %v208 = vxor.u32 %v176, %v192
    %v209 = vxor.u32 %v177, %v193
    %vm210 = vcmp.ge.u32.totalorder %v194, 2147483648
    %vm211 = vcmp.ge.u32.totalorder %v195, 2147483648
    %vm212 = vcmp.ge.u32.totalorder %v196, 2147483648
    %vm213 = vcmp.ge.u32.totalorder %v197, 2147483648
    %vm214 = vcmp.ge.u32.totalorder %v198, 2147483648
    %vm215 = vcmp.ge.u32.totalorder %v199, 2147483648
    %vm216 = vcmp.ge.u32.totalorder %v200, 2147483648
    %vm217 = vcmp.ge.u32.totalorder %v201, 2147483648
    %vm218 = vcmp.ge.u32.totalorder %v202, 2147483648
    %vm219 = vcmp.ge.u32.totalorder %v203, 2147483648
    %vm220 = vcmp.ge.u32.totalorder %v204, 2147483648
    %vm221 = vcmp.ge.u32.totalorder %v205, 2147483648
    %vm222 = vcmp.ge.u32.totalorder %v206, 2147483648
    %vm223 = vcmp.ge.u32.totalorder %v207, 2147483648
    %vm224 = vcmp.ge.u32.totalorder %v208, 2147483648
    %vm225 = vcmp.ge.u32.totalorder %v209, 2147483648
    %v226 = vld [vmem:[#allocation3] sm:$0xff]
    %v227 = vld [vmem:[#allocation3 + $0x8] sm:$0xff]
    %v228 = vmul.f32 %v226, 2.0
    %v229 = vmul.f32 %v227, 2.0
    %v232 = vlaneseq
    %v233 = vshrl.u32 %v232, 7
    %v234 = vsub.s32 0, %v233
    %v235 = vrot.slane %v228, %v234
    %v236 = vlaneseq
    %v237 = vshrl.u32 %v236, 7
    %v238 = vsub.s32 1, %v237
    %v239 = vrot.slane %v228, %v238
    %v240 = vlaneseq
    %v241 = vshrl.u32 %v240, 7
    %v242 = vsub.s32 2, %v241
    %v243 = vrot.slane %v228, %v242
    %v244 = vlaneseq
    %v245 = vshrl.u32 %v244, 7
    %v246 = vsub.s32 3, %v245
    %v247 = vrot.slane %v228, %v246
    %v248 = vlaneseq
    %v249 = vshrl.u32 %v248, 7
    %v250 = vsub.s32 4, %v249
    %v251 = vrot.slane %v228, %v250
    %v252 = vlaneseq
    %v253 = vshrl.u32 %v252, 7
    %v254 = vsub.s32 5, %v253
    %v255 = vrot.slane %v228, %v254
    %v256 = vlaneseq
    %v257 = vshrl.u32 %v256, 7
    %v258 = vsub.s32 6, %v257
    %v259 = vrot.slane %v228, %v258
    %v260 = vlaneseq
    %v261 = vshrl.u32 %v260, 7
    %v262 = vsub.s32 7, %v261
    %v263 = vrot.slane %v228, %v262
    %v264 = vlaneseq
    %v265 = vshrl.u32 %v264, 7
    %v266 = vsub.s32 0, %v265
    %v267 = vrot.slane %v229, %v266
    %v268 = vlaneseq
    %v269 = vshrl.u32 %v268, 7
    %v270 = vsub.s32 1, %v269
    %v271 = vrot.slane %v229, %v270
    %v272 = vlaneseq
    %v273 = vshrl.u32 %v272, 7
    %v274 = vsub.s32 2, %v273
    %v275 = vrot.slane %v229, %v274
    %v276 = vlaneseq
    %v277 = vshrl.u32 %v276, 7
    %v278 = vsub.s32 3, %v277
    %v279 = vrot.slane %v229, %v278
    %v280 = vlaneseq
    %v281 = vshrl.u32 %v280, 7
    %v282 = vsub.s32 4, %v281
    %v283 = vrot.slane %v229, %v282
    %v284 = vlaneseq
    %v285 = vshrl.u32 %v284, 7
    %v286 = vsub.s32 5, %v285
    %v287 = vrot.slane %v229, %v286
    %v288 = vlaneseq
    %v289 = vshrl.u32 %v288, 7
    %v290 = vsub.s32 6, %v289
    %v291 = vrot.slane %v229, %v290
    %v292 = vlaneseq
    %v293 = vshrl.u32 %v292, 7
    %v294 = vsub.s32 7, %v293
    %v295 = vrot.slane %v229, %v294
    %v312 = vsel %vm210, %v235, 0.0
    %v313 = vsel %vm211, %v239, 0.0
    %v314 = vsel %vm212, %v243, 0.0
    %v315 = vsel %vm213, %v247, 0.0
    %v316 = vsel %vm214, %v251, 0.0
    %v317 = vsel %vm215, %v255, 0.0
    %v318 = vsel %vm216, %v259, 0.0
    %v319 = vsel %vm217, %v263, 0.0
    %v320 = vsel %vm218, %v267, 0.0
    %v321 = vsel %vm219, %v271, 0.0
    %v322 = vsel %vm220, %v275, 0.0
    %v323 = vsel %vm221, %v279, 0.0
    %v324 = vsel %vm222, %v283, 0.0
    %v325 = vsel %vm223, %v287, 0.0
    %v326 = vsel %vm224, %v291, 0.0
    %v327 = vsel %vm225, %v295, 0.0
    %v344 = vcombine.low %v312, %v313
    %v345 = vcombine.low %v314, %v315
    %v346 = vcombine.low %v316, %v317
    %v347 = vcombine.low %v318, %v319
    %v349 = vunpack.c.l.s4 1966171168
    %v350 = vunpack.c.0.s8 %v349
    %v351 = vlaneseq
    %v352 = vshrl.u32 %v351, 7
    %v353 = vsub.s32 %v350, %v352
    %v354 = vrot.slane %v344, %v353
    %v356 = vunpack.c.l.s4 1966171168
    %v357 = vunpack.c.0.s8 %v356
    %v358 = vlaneseq
    %v359 = vshrl.u32 %v358, 7
    %v360 = vsub.s32 %v357, %v359
    %v361 = vrot.slane %v345, %v360
    %v363 = vunpack.c.l.s4 1966171168
    %v364 = vunpack.c.0.s8 %v363
    %v365 = vlaneseq
    %v366 = vshrl.u32 %v365, 7
    %v367 = vsub.s32 %v364, %v366
    %v368 = vrot.slane %v346, %v367
    %v370 = vunpack.c.l.s4 1966171168
    %v371 = vunpack.c.0.s8 %v370
    %v372 = vlaneseq
    %v373 = vshrl.u32 %v372, 7
    %v374 = vsub.s32 %v371, %v373
    %v375 = vrot.slane %v347, %v374
    %v376 = vcombine.low %v354, %v361
    %v377 = vcombine.low %v368, %v375
    %v379 = vunpack.c.l.s4 1966171168
    %v380 = vunpack.c.0.s8 %v379
    %v381 = vlaneseq
    %v382 = vshrl.u32 %v381, 7
    %v383 = vsub.s32 %v380, %v382
    %v384 = vrot.slane %v376, %v383
    %v386 = vunpack.c.l.s4 1966171168
    %v387 = vunpack.c.0.s8 %v386
    %v388 = vlaneseq
    %v389 = vshrl.u32 %v388, 7
    %v390 = vsub.s32 %v387, %v389
    %v391 = vrot.slane %v377, %v390
    %v392 = vcombine.low %v384, %v391
    %v393 = vcombine.low %v320, %v321
    %v394 = vcombine.low %v322, %v323
    %v395 = vcombine.low %v324, %v325
    %v396 = vcombine.low %v326, %v327
    %v398 = vunpack.c.l.s4 1966171168
    %v399 = vunpack.c.0.s8 %v398
    %v400 = vlaneseq
    %v401 = vshrl.u32 %v400, 7
    %v402 = vsub.s32 %v399, %v401
    %v403 = vrot.slane %v393, %v402
    %v405 = vunpack.c.l.s4 1966171168
    %v406 = vunpack.c.0.s8 %v405
    %v407 = vlaneseq
    %v408 = vshrl.u32 %v407, 7
    %v409 = vsub.s32 %v406, %v408
    %v410 = vrot.slane %v394, %v409
    %v412 = vunpack.c.l.s4 1966171168
    %v413 = vunpack.c.0.s8 %v412
    %v414 = vlaneseq
    %v415 = vshrl.u32 %v414, 7
    %v416 = vsub.s32 %v413, %v415
    %v417 = vrot.slane %v395, %v416
    %v419 = vunpack.c.l.s4 1966171168
    %v420 = vunpack.c.0.s8 %v419
    %v421 = vlaneseq
    %v422 = vshrl.u32 %v421, 7
    %v423 = vsub.s32 %v420, %v422
    %v424 = vrot.slane %v396, %v423
    %v425 = vcombine.low %v403, %v410
    %v426 = vcombine.low %v417, %v424
    %v428 = vunpack.c.l.s4 1966171168
    %v429 = vunpack.c.0.s8 %v428
    %v430 = vlaneseq
    %v431 = vshrl.u32 %v430, 7
    %v432 = vsub.s32 %v429, %v431
    %v433 = vrot.slane %v425, %v432
    %v435 = vunpack.c.l.s4 1966171168
    %v436 = vunpack.c.0.s8 %v435
    %v437 = vlaneseq
    %v438 = vshrl.u32 %v437, 7
    %v439 = vsub.s32 %v436, %v438
    %v440 = vrot.slane %v426, %v439
    %v441 = vcombine.low %v433, %v440
    %444 = vst [vmem:[#allocation6] sm:$0xff] %v392
    %445 = vst [vmem:[#allocation6 + $0x8] sm:$0xff] %v441
    // Predicated region
    $region14: #{tpu_custom_call.1} parent=1 // pred_check
      _
    $region15: #{tpu_custom_call.1} parent=1 // pred_check_branch
      %447 = sbr.rel (0) target = $region17
    $region16: #{tpu_custom_call.1} parent=1 // pred_region
      %s449 = ssub.s32 256, 256
      %450 = vsyncadd [#allocation5], %s449
      %s452 = sshll.u32 [#allocation6], 4
      %s453 = int_to_ptr.vmem [resolvable:$true] %s452
      %455 = dma.vmem_to_hbm [thread:$0]  %s453, 256, %s2, [#allocation5]
    $region17: #{tpu_custom_call.1} parent=1 // pred_fallthru
      _
    // Predicated region
    $region18: #{tpu_custom_call.1} parent=1 // pred_check
      _
    $region19: #{tpu_custom_call.1} parent=1 // pred_check_branch
      %457 = sbr.rel (0) target = $region21
    $region20: #{tpu_custom_call.1} parent=1 // pred_region
      %458 = dma.done [#allocation5], 256
    $region21: #{tpu_custom_call.1} parent=1 // pred_fallthru
      _
    %459 = vsyncpa [#allocation4], 1
    %460 = vsyncpa [#allocation5], 1

</llo_original>
